<compile_context>
chip_gen: v7x
topology: tpu7x:2x2x1
jax: 0.10.0
libtpu: 0.0.40
codegen_flags: <defaults>
</compile_context>

<pallas_src>
import functools

import jax
import jax.numpy as jnp
from jax.experimental import pallas as pl
from jax.experimental.pallas import tpu as pltpu


# ----------------------------- config (cfg.model.*) -----------------------------
HIDDEN_DIM = 32      # cfg.model.hidden_dim
NUM_LAYERS = 2       # cfg.model.layers  (so self.layer = NUM_LAYERS + 1)
RESIDUAL = True      # cfg.model.residual
INPUT_DIM = 16
OUTPUT_DIM = 8
BATCH = 8

H2 = 2 * HIDDEN_DIM      # fused (drift|noise) hidden width
OUT2 = 2 * OUTPUT_DIM    # fused (drift|noise) output width


# ----------------------------- Pallas kernel -----------------------------
def sdenet_kernel(x_ref, w_ref, b_ref, out_ref, *,
                  num_layers, residual, input_dim, out2):
    """Fused SDENet forward.

    x_ref:   (tile_b, input_dim)
    w_ref:   (num_layers + 2, 2H, 2H) packed weights:
               [0]     : fused encoder weight in rows [:input_dim]  ([enc_w | enc_w])
               [1..L]  : block_diag(dr_hw[i], no_hw[i])
               [L + 1] : block_diag(dr_ow, no_ow) packed in cols [:2*OUT]
    b_ref:   (num_layers + 2, 1, 2H) packed biases (same layout, zero-padded)
    out_ref: (tile_b, 2*OUT); drift in lanes [:OUT], noise in lanes [OUT:2*OUT]
    """
    x = x_ref[...]

    # Fused encoder: static ref slice -> only input_dim sublane rows are loaded.
    w_enc = w_ref[0, 0:input_dim, :]
    a = jnp.maximum(
        jnp.dot(x, w_enc, preferred_element_type=jnp.float32) + b_ref[0], 0.0)

    # Fused hidden drift/noise layers: one block-diagonal matmul per layer.
    # (num_layers is tiny and static; for deep stacks switch to
    #  lax.fori_loop(..., unroll=True) with a dynamic leading index.)
    for i in range(num_layers):
        h = jnp.maximum(
            jnp.dot(a, w_ref[1 + i], preferred_element_type=jnp.float32)
            + b_ref[1 + i], 0.0)
        a = a + h if residual else h

    # Fused output heads: only the meaningful 2*OUT columns are loaded/computed.
    w_out = w_ref[num_layers + 1, :, 0:out2]
    b_out = b_ref[num_layers + 1, :, 0:out2]
    out_ref[...] = jnp.maximum(
        jnp.dot(a, w_out, preferred_element_type=jnp.float32) + b_out, 0.0)


# ----------------------------- batch-tile selection -----------------------------
def _choose_tile_b(B, cap=512):
    """Largest multiple-of-8 divisor of B that is <= min(B//2, cap).

    Guarantees >= 2 grid steps whenever B >= 16 (so v7x's two TensorCores are
    both engaged via the "parallel" grid axis) while keeping per-step tiles
    large enough to amortize the ~0.35 us/step overhead. Falls back to one
    full-batch tile for small / awkward batch sizes.
    """
    if B <= 8:
        return B
    hi = min(B // 2, cap)
    t = (hi // 8) * 8
    while t >= 8:
        if B % t == 0:
            return t
        t -= 8
    return B


# ----------------------------- wrapper -----------------------------
def sdenet_forward(x, w_pack, b_pack, *,
                   num_layers=NUM_LAYERS, residual=RESIDUAL,
                   output_dim=OUTPUT_DIM, tile_b=None):
    """Runs the fused SDENet forward pass in one Pallas call. Returns (drift, noise)."""
    B, in_dim = x.shape
    out2 = 2 * output_dim

    if tile_b is None:
        tile_b = _choose_tile_b(B)
    assert B % tile_b == 0, "batch must be divisible by the chosen batch tile"

    kernel = functools.partial(sdenet_kernel,
                               num_layers=num_layers,
                               residual=residual,
                               input_dim=in_dim,
                               out2=out2)

    out = pl.pallas_call(
        kernel,
        out_shape=jax.ShapeDtypeStruct((B, out2), jnp.float32),
        grid=(B // tile_b,),
        in_specs=[
            pl.BlockSpec((tile_b, in_dim), lambda i: (i, 0)),
            pl.BlockSpec(w_pack.shape, lambda i: (0, 0, 0)),   # whole weight stack
            pl.BlockSpec(b_pack.shape, lambda i: (0, 0, 0)),   # whole bias stack
        ],
        out_specs=pl.BlockSpec((tile_b, out2), lambda i: (i, 0)),
        compiler_params=pltpu.CompilerParams(
            dimension_semantics=("parallel",)),
    )(x, w_pack, b_pack)

    drift = out[:, :output_dim]
    noise = out[:, output_dim:]
    return drift, noise


# ----------------------------- param packing -----------------------------
def pack_params(params, *, num_layers=NUM_LAYERS):
    """Packs per-layer drift/noise weights into block-diagonal fused stacks."""
    H, IN, OUT = HIDDEN_DIM, INPUT_DIM, OUTPUT_DIM
    L = num_layers

    assert IN <= H2, "encoder input_dim must fit the 2H-row packing slot"
    assert OUT <= H, "output_dim must be <= hidden_dim for block-diagonal head packing"

    w_pack = jnp.zeros((L + 2, H2, H2), jnp.float32)
    b_pack = jnp.zeros((L + 2, 1, H2), jnp.float32)

    # encoder: both streams see the same encoder output -> duplicate the weight
    w_pack = w_pack.at[0, :IN, :H].set(params["enc_w"])
    w_pack = w_pack.at[0, :IN, H:].set(params["enc_w"])
    b_pack = b_pack.at[0, 0, :H].set(params["enc_b"][0])
    b_pack = b_pack.at[0, 0, H:].set(params["enc_b"][0])

    # hidden layers: block-diagonal so drift/noise never mix
    for i in range(L):
        w_pack = w_pack.at[1 + i, :H, :H].set(params["dr_hw"][i])
        w_pack = w_pack.at[1 + i, H:, H:].set(params["no_hw"][i])
        b_pack = b_pack.at[1 + i, 0, :H].set(params["dr_hb"][i, 0])
        b_pack = b_pack.at[1 + i, 0, H:].set(params["no_hb"][i, 0])

    # output heads: block-diagonal, packed into the first 2*OUT columns
    w_pack = w_pack.at[L + 1, :H, :OUT].set(params["dr_ow"])
    w_pack = w_pack.at[L + 1, H:, OUT:2 * OUT].set(params["no_ow"])
    b_pack = b_pack.at[L + 1, 0, :OUT].set(params["dr_ob"][0])
    b_pack = b_pack.at[L + 1, 0, OUT:2 * OUT].set(params["no_ob"][0])

    return w_pack, b_pack


# ----------------------------- reference (plain JAX, unfused) -----------------------------
def sdenet_reference(x, params, *, num_layers=NUM_LAYERS, residual=RESIDUAL):
    z = jnp.maximum(x @ params["enc_w"] + params["enc_b"], 0.0)
    drift, noise = z, z
    for i in range(num_layers):
        dh = jnp.maximum(drift @ params["dr_hw"][i] + params["dr_hb"][i], 0.0)
        nh = jnp.maximum(noise @ params["no_hw"][i] + params["no_hb"][i], 0.0)
        if residual:
            drift, noise = drift + dh, noise + nh
        else:
            drift, noise = dh, nh
    drift = jnp.maximum(drift @ params["dr_ow"] + params["dr_ob"], 0.0)
    noise = jnp.maximum(noise @ params["no_ow"] + params["no_ob"], 0.0)
    return drift, noise


# ----------------------------- deterministic param init -----------------------------
def init_params(key):
    ks = jax.random.split(key, 10)
    scale = 0.1
    return {
        "enc_w": scale * jax.random.normal(ks[0], (INPUT_DIM, HIDDEN_DIM), jnp.float32),
        "enc_b": scale * jax.random.normal(ks[1], (1, HIDDEN_DIM), jnp.float32),
        "dr_hw": scale * jax.random.normal(ks[2], (NUM_LAYERS, HIDDEN_DIM, HIDDEN_DIM), jnp.float32),
        "dr_hb": scale * jax.random.normal(ks[3], (NUM_LAYERS, 1, HIDDEN_DIM), jnp.float32),
        "dr_ow": scale * jax.random.normal(ks[4], (HIDDEN_DIM, OUTPUT_DIM), jnp.float32),
        "dr_ob": scale * jax.random.normal(ks[5], (1, OUTPUT_DIM), jnp.float32),
        "no_hw": scale * jax.random.normal(ks[6], (NUM_LAYERS, HIDDEN_DIM, HIDDEN_DIM), jnp.float32),
        "no_hb": scale * jax.random.normal(ks[7], (NUM_LAYERS, 1, HIDDEN_DIM), jnp.float32),
        "no_ow": scale * jax.random.normal(ks[8], (HIDDEN_DIM, OUTPUT_DIM), jnp.float32),
        "no_ob": scale * jax.random.normal(ks[9], (1, OUTPUT_DIM), jnp.float32),
    }


if __name__ == "__main__":
    key = jax.random.PRNGKey(0)
    k_x, k_p, k_x2 = jax.random.split(key, 3)

    params = init_params(k_p)
    w_pack, b_pack = pack_params(params)

    # Small batch (grid = (1,)).
    x = jax.random.normal(k_x, (BATCH, INPUT_DIM), jnp.float32)
    drift, noise = sdenet_forward(x, w_pack, b_pack)
    drift, noise = jax.block_until_ready((drift, noise))
    drift_ref, noise_ref = sdenet_reference(x, params)
    assert drift.shape == (BATCH, OUTPUT_DIM) and noise.shape == (BATCH, OUTPUT_DIM)
    assert jnp.allclose(drift, drift_ref, atol=1e-5, rtol=1e-5)
    assert jnp.allclose(noise, noise_ref, atol=1e-5, rtol=1e-5)

    # Larger batch exercising a multi-step parallel grid (tile_b=32 -> grid=(2,)).
    B2 = 64
    x2 = jax.random.normal(k_x2, (B2, INPUT_DIM), jnp.float32)
    drift2, noise2 = sdenet_forward(x2, w_pack, b_pack)
    drift2, noise2 = jax.block_until_ready((drift2, noise2))
    drift2_ref, noise2_ref = sdenet_reference(x2, params)
    assert jnp.allclose(drift2, drift2_ref, atol=1e-5, rtol=1e-5)
    assert jnp.allclose(noise2, noise2_ref, atol=1e-5, rtol=1e-5)

    print("KERNEL_OK")
</pallas_src>

<mosaic_0001>
module attributes {stable_mosaic.version = 11 : i64} {
  func.func @sdenet_kernel(%arg0: i32, %arg1: memref<8x16xf32, #tpu.memory_space<vmem>>, %arg2: memref<4x64x64xf32, #tpu.memory_space<vmem>>, %arg3: memref<4x1x64xf32, #tpu.memory_space<vmem>>, %arg4: memref<8x16xf32, #tpu.memory_space<vmem>>) attributes {dimension_semantics = [#tpu.dimension_semantics<parallel>], iteration_bounds = array<i64: 1>, scalar_prefetch = 0 : i64, scratch_operands = 0 : i64, tpu.core_type = #tpu.core_type<tc>, window_params = [{transform_indices = @transform_0, window_bounds = array<i64: 8, 16>}, {pipeline_mode = #tpu.pipeline_mode<synchronous>, transform_indices = @transform_1, window_bounds = array<i64: 4, 64, 64>}, {pipeline_mode = #tpu.pipeline_mode<synchronous>, transform_indices = @transform_2, window_bounds = array<i64: 4, 1, 64>}, {transform_indices = @transform_3, window_bounds = array<i64: 8, 16>}]} {
    %c0 = arith.constant 0 : index
    %c0_0 = arith.constant 0 : index
    %0 = vector.load %arg1[%c0, %c0_0] : memref<8x16xf32, #tpu.memory_space<vmem>>, vector<8x16xf32>
    %c0_1 = arith.constant 0 : index
    %c0_2 = arith.constant 0 : index
    %c0_3 = arith.constant 0 : index
    %1 = vector.load %arg2[%c0_1, %c0_2, %c0_3] : memref<4x64x64xf32, #tpu.memory_space<vmem>>, vector<1x16x64xf32>
    %2 = vector.shape_cast %1 : vector<1x16x64xf32> to vector<16x64xf32>
    %cst = arith.constant dense<0.000000e+00> : vector<8x64xf32>
    %3 = tpu.matmul %0, %2, %cst {dimension_numbers = #tpu.dot_dimension_numbers<[1], [0], [0], [1], [0, 0, 1, 1], [], []>} : vector<8x16xf32>, vector<16x64xf32>, vector<8x64xf32> -> vector<8x64xf32>
    %c0_4 = arith.constant 0 : index
    %c0_5 = arith.constant 0 : index
    %c0_6 = arith.constant 0 : index
    %4 = vector.load %arg3[%c0_4, %c0_5, %c0_6] : memref<4x1x64xf32, #tpu.memory_space<vmem>>, vector<1x1x64xf32>
    %5 = vector.shape_cast %4 : vector<1x1x64xf32> to vector<1x64xf32>
    %6 = vector.broadcast %5 : vector<1x64xf32> to vector<8x64xf32>
    %7 = arith.addf %3, %6 : vector<8x64xf32>
    %cst_7 = arith.constant 0.000000e+00 : f32
    %8 = vector.broadcast %cst_7 : f32 to vector<8x64xf32>
    %9 = arith.maximumf %7, %8 : vector<8x64xf32>
    %c1 = arith.constant 1 : index
    %c0_8 = arith.constant 0 : index
    %c0_9 = arith.constant 0 : index
    %10 = vector.load %arg2[%c1, %c0_8, %c0_9] : memref<4x64x64xf32, #tpu.memory_space<vmem>>, vector<1x64x64xf32>
    %11 = vector.shape_cast %10 : vector<1x64x64xf32> to vector<64x64xf32>
    %cst_10 = arith.constant dense<0.000000e+00> : vector<8x64xf32>
    %12 = tpu.matmul %9, %11, %cst_10 {dimension_numbers = #tpu.dot_dimension_numbers<[1], [0], [0], [1], [0, 0, 1, 1], [], []>} : vector<8x64xf32>, vector<64x64xf32>, vector<8x64xf32> -> vector<8x64xf32>
    %c1_11 = arith.constant 1 : index
    %c0_12 = arith.constant 0 : index
    %c0_13 = arith.constant 0 : index
    %13 = vector.load %arg3[%c1_11, %c0_12, %c0_13] : memref<4x1x64xf32, #tpu.memory_space<vmem>>, vector<1x1x64xf32>
    %14 = vector.shape_cast %13 : vector<1x1x64xf32> to vector<1x64xf32>
    %15 = vector.broadcast %14 : vector<1x64xf32> to vector<8x64xf32>
    %16 = arith.addf %12, %15 : vector<8x64xf32>
    %cst_14 = arith.constant 0.000000e+00 : f32
    %17 = vector.broadcast %cst_14 : f32 to vector<8x64xf32>
    %18 = arith.maximumf %16, %17 : vector<8x64xf32>
    %19 = arith.addf %9, %18 : vector<8x64xf32>
    %c2 = arith.constant 2 : index
    %c0_15 = arith.constant 0 : index
    %c0_16 = arith.constant 0 : index
    %20 = vector.load %arg2[%c2, %c0_15, %c0_16] : memref<4x64x64xf32, #tpu.memory_space<vmem>>, vector<1x64x64xf32>
    %21 = vector.shape_cast %20 : vector<1x64x64xf32> to vector<64x64xf32>
    %cst_17 = arith.constant dense<0.000000e+00> : vector<8x64xf32>
    %22 = tpu.matmul %19, %21, %cst_17 {dimension_numbers = #tpu.dot_dimension_numbers<[1], [0], [0], [1], [0, 0, 1, 1], [], []>} : vector<8x64xf32>, vector<64x64xf32>, vector<8x64xf32> -> vector<8x64xf32>
    %c2_18 = arith.constant 2 : index
    %c0_19 = arith.constant 0 : index
    %c0_20 = arith.constant 0 : index
    %23 = vector.load %arg3[%c2_18, %c0_19, %c0_20] : memref<4x1x64xf32, #tpu.memory_space<vmem>>, vector<1x1x64xf32>
    %24 = vector.shape_cast %23 : vector<1x1x64xf32> to vector<1x64xf32>
    %25 = vector.broadcast %24 : vector<1x64xf32> to vector<8x64xf32>
    %26 = arith.addf %22, %25 : vector<8x64xf32>
    %cst_21 = arith.constant 0.000000e+00 : f32
    %27 = vector.broadcast %cst_21 : f32 to vector<8x64xf32>
    %28 = arith.maximumf %26, %27 : vector<8x64xf32>
    %29 = arith.addf %19, %28 : vector<8x64xf32>
    %c3 = arith.constant 3 : index
    %c0_22 = arith.constant 0 : index
    %c0_23 = arith.constant 0 : index
    %30 = vector.load %arg2[%c3, %c0_22, %c0_23] : memref<4x64x64xf32, #tpu.memory_space<vmem>>, vector<1x64x16xf32>
    %31 = vector.shape_cast %30 : vector<1x64x16xf32> to vector<64x16xf32>
    %c3_24 = arith.constant 3 : index
    %c0_25 = arith.constant 0 : index
    %c0_26 = arith.constant 0 : index
    %32 = vector.load %arg3[%c3_24, %c0_25, %c0_26] : memref<4x1x64xf32, #tpu.memory_space<vmem>>, vector<1x1x16xf32>
    %33 = vector.shape_cast %32 : vector<1x1x16xf32> to vector<1x16xf32>
    %cst_27 = arith.constant dense<0.000000e+00> : vector<8x16xf32>
    %34 = tpu.matmul %29, %31, %cst_27 {dimension_numbers = #tpu.dot_dimension_numbers<[1], [0], [0], [1], [0, 0, 1, 1], [], []>} : vector<8x64xf32>, vector<64x16xf32>, vector<8x16xf32> -> vector<8x16xf32>
    %35 = vector.broadcast %33 : vector<1x16xf32> to vector<8x16xf32>
    %36 = arith.addf %34, %35 : vector<8x16xf32>
    %cst_28 = arith.constant 0.000000e+00 : f32
    %37 = vector.broadcast %cst_28 : f32 to vector<8x16xf32>
    %38 = arith.maximumf %36, %37 : vector<8x16xf32>
    %c0_29 = arith.constant 0 : index
    %c0_30 = arith.constant 0 : index
    %39 = vector.load %arg4[%c0_29, %c0_30] : memref<8x16xf32, #tpu.memory_space<vmem>>, vector<8x16xf32>
    tpu.vector_store %arg4[%c0_29, %c0_30], %38 {strides = array<i32>} : memref<8x16xf32, #tpu.memory_space<vmem>>, vector<8x16xf32>,
    return
  }
  func.func @transform_0(%arg0: i32) -> (i32, i32) {
    %c0_i32 = arith.constant 0 : i32
    %c0_i32_0 = arith.constant 0 : i32
    return %arg0, %c0_i32 : i32, i32
  }
  func.func @transform_1(%arg0: i32) -> (i32, i32, i32) {
    %c0_i32 = arith.constant 0 : i32
    %c0_i32_0 = arith.constant 0 : i32
    %c0_i32_1 = arith.constant 0 : i32
    %c0_i32_2 = arith.constant 0 : i32
    return %c0_i32, %c0_i32_0, %c0_i32_1 : i32, i32, i32
  }
  func.func @transform_2(%arg0: i32) -> (i32, i32, i32) {
    %c0_i32 = arith.constant 0 : i32
    %c0_i32_0 = arith.constant 0 : i32
    %c0_i32_1 = arith.constant 0 : i32
    %c0_i32_2 = arith.constant 0 : i32
    return %c0_i32, %c0_i32_0, %c0_i32_1 : i32, i32, i32
  }
  func.func @transform_3(%arg0: i32) -> (i32, i32) {
    %c0_i32 = arith.constant 0 : i32
    %c0_i32_0 = arith.constant 0 : i32
    return %arg0, %c0_i32 : i32, i32
  }
}

</mosaic_0001>

<llo_original>
// kernel: tpu_custom_call.1
$region0: #{tpu_custom_call.1}
  #allocation0 [shape = 'u32[]', space=smem, size = 0x4, offset = 0x4, fixed_abs, tag = 'smem constant byte address 0x4 - core index']
  #allocation1 [shape = 'u32[144,128]{1,0:T(1,128)}', space=vmem, size = 0x12000, scoped, tag = 'internal scratch']
  %s0 = inlined_call_operand.hbm [shape: f32[8,16], index: 0, kind: input, shape index: {}]
  %s1 = inlined_call_operand.hbm [shape: f32[4,64,64], index: 1, kind: input, shape index: {}]
  %s2 = inlined_call_operand.vmem [shape: f32[4,1,64], index: 2, kind: input, shape index: {}]
  %s3 = inlined_call_operand.hbm [shape: f32[8,16], index: 3, kind: output, shape index: {}]
  %s4 = sld [smem:[#allocation0]]
  $region30: #{tpu_custom_call.1} parent=0
    _
  %s6 = ssub.s32 1, %s4
  %s7 = scalar_select 0, %s6, %s4
  $region1: #{tpu_custom_call.1} parent=0
    #allocation2 [shape = 'u8[4096]{0}', space=vmem, size = 0x1000, scoped, tag = 'input window, operand 0, single buffered']
    #allocation3 [shape = 's32[1]{0}', space=sflag, size = 0x4, scoped, tag = 'scoped memory for tpu_custom_call.1']
    #allocation4 [shape = 's32[1]{0}', space=sflag, size = 0x4, scoped, tag = 'scoped memory for tpu_custom_call.1']
    #allocation5 [shape = 'u8[131072]{0}', space=vmem, size = 0x20000, scoped, tag = 'input window, operand 1, single buffered']
    #allocation6 [shape = 's32[1]{0}', space=sflag, size = 0x4, scoped, tag = 'scoped memory for tpu_custom_call.1']
    #allocation7 [shape = 'u8[4096]{0}', space=vmem, size = 0x1000, scoped, tag = 'output window, operand 0, single buffered']
    %8 = vsyncpa [#allocation3], 0
    %9 = vsyncpa [#allocation6], 0
    %10 = vsyncpa [#allocation4], 0
    // Predicated region
    $region2: #{tpu_custom_call.1} parent=1 // pred_check
      _
    $region3: #{tpu_custom_call.1} parent=1 // pred_check_branch
      %12 = sbr.rel (0) target = $region5
    $region4: #{tpu_custom_call.1} parent=1 // pred_region
      %s14 = ssub.s32 128, 128
      %15 = vsyncadd [#allocation3], %s14
      %s17 = sshll.u32 [#allocation2], 4
      %s18 = int_to_ptr.vmem [resolvable:$true] %s17
      %20 = dma.hbm_to_vmem [thread:$0]  %s0, 128, %s18, [#allocation3]
    $region5: #{tpu_custom_call.1} parent=1 // pred_fallthru
      _
    // Predicated region
    $region6: #{tpu_custom_call.1} parent=1 // pred_check
      _
    $region7: #{tpu_custom_call.1} parent=1 // pred_check_branch
      %22 = sbr.rel (0) target = $region9
    $region8: #{tpu_custom_call.1} parent=1 // pred_region
      %s24 = ssub.s32 4096, 4096
      %25 = vsyncadd [#allocation6], %s24
      %s26 = sshll.u32 [#allocation5], 4
      %s27 = int_to_ptr.vmem [resolvable:$true] %s26
      %32 = dma.hbm_to_vmem [thread:$0]  %s1, 4096, %s27, [#allocation6], 128, 128, 8
    $region9: #{tpu_custom_call.1} parent=1 // pred_fallthru
      _
    // Predicated region
    $region10: #{tpu_custom_call.1} parent=1 // pred_check
      _
    $region11: #{tpu_custom_call.1} parent=1 // pred_check_branch
      %34 = sbr.rel (0) target = $region13
    $region12: #{tpu_custom_call.1} parent=1 // pred_region
      _
    $region13: #{tpu_custom_call.1} parent=1 // pred_fallthru
      _
    // Predicated region
    $region14: #{tpu_custom_call.1} parent=1 // pred_check
      _
    $region15: #{tpu_custom_call.1} parent=1 // pred_check_branch
      %36 = sbr.rel (0) target = $region17
    $region16: #{tpu_custom_call.1} parent=1 // pred_region
      %37 = dma.done [#allocation3], 128
    $region17: #{tpu_custom_call.1} parent=1 // pred_fallthru
      _
    // Predicated region
    $region18: #{tpu_custom_call.1} parent=1 // pred_check
      _
    $region19: #{tpu_custom_call.1} parent=1 // pred_check_branch
      %39 = sbr.rel (0) target = $region21
    $region20: #{tpu_custom_call.1} parent=1 // pred_region
      %40 = dma.done [#allocation6], 4096
    $region21: #{tpu_custom_call.1} parent=1 // pred_fallthru
      _
    %v41 = vld [vmem:[#allocation2] sm:$0xff]
    %v42 = vld [vmem:[#allocation5] sm:$0xff]
    %v43 = vld [vmem:[#allocation5 + $0x8] sm:$0xff]
    %v44 = vld [vmem:[%s2] sm:$0x1]
    %v46 = vlaneseq
    %v47 = vshrl.u32 %v46, 7
    %v48 = vsub.s32 0, %v47
    %v49 = vrot.slane %v44, %v48
    %vm51 = vcmask 130048
    %v53 = vsel %vm51, %v41, 0
    %55 = vmatprep.subr.mxu0 0.0
    %56 = vmatpush1.msra.mxu0 %v42
    %57 = vmatprep.subr.mxu0 0.0
    %58 = vmatpush1.msra.mxu0 %v43
    %59 = vmatprep.subr.mxu0 0.0
    %60 = vmatpush1.msra.mxu0 0.0
    %61 = vmatprep.subr.mxu0 0.0
    %62 = vmatpush1.msra.mxu0 0.0
    %63 = vmatprep.subr.mxu0 0.0
    %64 = vmatpush1.msra.mxu0 0.0
    %65 = vmatprep.subr.mxu0 0.0
    %66 = vmatpush1.msra.mxu0 0.0
    %67 = vmatprep.subr.mxu0 0.0
    %68 = vmatpush1.msra.mxu0 0.0
    %69 = vmatprep.subr.mxu0 0.0
    %70 = vmatpush1.msra.mxu0 0.0
    %71 = vmatprep.subr.mxu0 0.0
    %72 = vmatpush1.msra.mxu0 0.0
    %73 = vmatprep.subr.mxu0 0.0
    %74 = vmatpush1.msra.mxu0 0.0
    %75 = vmatprep.subr.mxu0 0.0
    %76 = vmatpush1.msra.mxu0 0.0
    %77 = vmatprep.subr.mxu0 0.0
    %78 = vmatpush1.msra.mxu0 0.0
    %79 = vmatprep.subr.mxu0 0.0
    %80 = vmatpush1.msra.mxu0 0.0
    %81 = vmatprep.subr.mxu0 0.0
    %82 = vmatpush1.msra.mxu0 0.0
    %83 = vmatprep.subr.mxu0 0.0
    %84 = vmatpush1.msra.mxu0 0.0
    %85 = vmatprep.subr.mxu0 0.0
    %86 = vmatpush1.msra.mxu0 0.0
    %87 = vmatprep.subr.mxu0 0.0
    %88 = vmatpush1.msra.mxu0 0.0
    %89 = vmatprep.subr.mxu0 0.0
    %90 = vmatpush1.msra.mxu0 0.0
    %91 = vmatprep.subr.mxu0 0.0
    %92 = vmatpush1.msra.mxu0 0.0
    %93 = vmatprep.subr.mxu0 0.0
    %94 = vmatpush1.msra.mxu0 0.0
    %95 = vmatprep.subr.mxu0 0.0
    %96 = vmatpush1.msra.mxu0 0.0
    %97 = vmatprep.subr.mxu0 0.0
    %98 = vmatpush1.msra.mxu0 0.0
    %99 = vmatprep.subr.mxu0 0.0
    %100 = vmatpush1.msra.mxu0 0.0
    %101 = vmatprep.subr.mxu0 0.0
    %102 = vmatpush1.msra.mxu0 0.0
    %103 = vmatprep.subr.mxu0 0.0
    %104 = vmatpush1.msra.mxu0 0.0
    %105 = vmatprep.subr.mxu0 0.0
    %106 = vmatpush1.msra.mxu0 0.0
    %107 = vmatprep.subr.mxu0 0.0
    %108 = vmatpush1.msra.mxu0 0.0
    %109 = vmatprep.subr.mxu0 0.0
    %110 = vmatpush1.msra.mxu0 0.0
    %111 = vmatprep.subr.mxu0 0.0
    %112 = vmatpush1.msra.mxu0 0.0
    %113 = vmatprep.subr.mxu0 0.0
    %114 = vmatpush1.msra.mxu0 0.0
    %115 = vmatprep.subr.mxu0 0.0
    %116 = vmatpush1.msra.mxu0 0.0
    %117 = vmatprep.subr.mxu0 0.0
    %118 = vmatpush1.msra.mxu0 0.0
    %119 = vmatprep.mubr.f32.mxu0 0.0
    %120 = vmatmul.mubr.f32.gmra.mrb[0].mxu0 %v53
    %v121 = vpop.f32.mrb[0].mxu0
    %v122 = vadd.f32 %v49, %v121
    %v123 = vpop.f32.mrb[0].mxu0
    %124 = vdwg.mxu0
    %v125 = vmax.f32 %v122, 0.0
    %s126 = scalar_lea.vmem [#allocation5], 64
    %v127 = vld [vmem:[%s126] sm:$0xff]
    %v128 = vld [vmem:[%s126 + $0x8] sm:$0xff]
    %v129 = vld [vmem:[%s126 + $0x10] sm:$0xff]
    %v130 = vld [vmem:[%s126 + $0x18] sm:$0xff]
    %v131 = vld [vmem:[%s126 + $0x20] sm:$0xff]
    %v132 = vld [vmem:[%s126 + $0x28] sm:$0xff]
    %v133 = vld [vmem:[%s126 + $0x30] sm:$0xff]
    %v134 = vld [vmem:[%s126 + $0x38] sm:$0xff]
    %s135 = scalar_lea.vmem %s2, 1
    %v136 = vld [vmem:[%s135] sm:$0x1]
    %v138 = vlaneseq
    %v139 = vshrl.u32 %v138, 7
    %v140 = vsub.s32 0, %v139
    %v141 = vrot.slane %v136, %v140
    %vm143 = vcmask 523264
    %v145 = vsel %vm143, %v125, 0
    %147 = vmatprep.subr.mxu0 0.0
    %148 = vmatpush1.msra.mxu0 %v127
    %149 = vmatprep.subr.mxu0 0.0
    %150 = vmatpush1.msra.mxu0 %v128
    %151 = vmatprep.subr.mxu0 0.0
    %152 = vmatpush1.msra.mxu0 %v129
    %153 = vmatprep.subr.mxu0 0.0
    %154 = vmatpush1.msra.mxu0 %v130
    %155 = vmatprep.subr.mxu0 0.0
    %156 = vmatpush1.msra.mxu0 %v131
    %157 = vmatprep.subr.mxu0 0.0
    %158 = vmatpush1.msra.mxu0 %v132
    %159 = vmatprep.subr.mxu0 0.0
    %160 = vmatpush1.msra.mxu0 %v133
    %161 = vmatprep.subr.mxu0 0.0
    %162 = vmatpush1.msra.mxu0 %v134
    %163 = vmatprep.subr.mxu0 0.0
    %164 = vmatpush1.msra.mxu0 0.0
    %165 = vmatprep.subr.mxu0 0.0
    %166 = vmatpush1.msra.mxu0 0.0
    %167 = vmatprep.subr.mxu0 0.0
    %168 = vmatpush1.msra.mxu0 0.0
    %169 = vmatprep.subr.mxu0 0.0
    %170 = vmatpush1.msra.mxu0 0.0
    %171 = vmatprep.subr.mxu0 0.0
    %172 = vmatpush1.msra.mxu0 0.0
    %173 = vmatprep.subr.mxu0 0.0
    %174 = vmatpush1.msra.mxu0 0.0
    %175 = vmatprep.subr.mxu0 0.0
    %176 = vmatpush1.msra.mxu0 0.0
    %177 = vmatprep.subr.mxu0 0.0
    %178 = vmatpush1.msra.mxu0 0.0
    %179 = vmatprep.subr.mxu0 0.0
    %180 = vmatpush1.msra.mxu0 0.0
    %181 = vmatprep.subr.mxu0 0.0
    %182 = vmatpush1.msra.mxu0 0.0
    %183 = vmatprep.subr.mxu0 0.0
    %184 = vmatpush1.msra.mxu0 0.0
    %185 = vmatprep.subr.mxu0 0.0
    %186 = vmatpush1.msra.mxu0 0.0
    %187 = vmatprep.subr.mxu0 0.0
    %188 = vmatpush1.msra.mxu0 0.0
    %189 = vmatprep.subr.mxu0 0.0
    %190 = vmatpush1.msra.mxu0 0.0
    %191 = vmatprep.subr.mxu0 0.0
    %192 = vmatpush1.msra.mxu0 0.0
    %193 = vmatprep.subr.mxu0 0.0
    %194 = vmatpush1.msra.mxu0 0.0
    %195 = vmatprep.subr.mxu0 0.0
    %196 = vmatpush1.msra.mxu0 0.0
    %197 = vmatprep.subr.mxu0 0.0
    %198 = vmatpush1.msra.mxu0 0.0
    %199 = vmatprep.subr.mxu0 0.0
    %200 = vmatpush1.msra.mxu0 0.0
    %201 = vmatprep.subr.mxu0 0.0
    %202 = vmatpush1.msra.mxu0 0.0
    %203 = vmatprep.subr.mxu0 0.0
    %204 = vmatpush1.msra.mxu0 0.0
    %205 = vmatprep.subr.mxu0 0.0
    %206 = vmatpush1.msra.mxu0 0.0
    %207 = vmatprep.subr.mxu0 0.0
    %208 = vmatpush1.msra.mxu0 0.0
    %209 = vmatprep.subr.mxu0 0.0
    %210 = vmatpush1.msra.mxu0 0.0
    %211 = vmatprep.mubr.f32.mxu0 0.0
    %212 = vmatmul.mubr.f32.gmra.mrb[0].mxu0 %v145
    %v213 = vpop.f32.mrb[0].mxu0
    %v214 = vadd.f32 %v141, %v213
    %v215 = vpop.f32.mrb[0].mxu0
    %216 = vdwg.mxu0
    %v217 = vmax.f32 %v214, 0.0
    %v218 = vadd.f32 %v125, %v217
    %s219 = scalar_lea.vmem [#allocation5], 128
    %v220 = vld [vmem:[%s219] sm:$0xff]
    %v221 = vld [vmem:[%s219 + $0x8] sm:$0xff]
    %v222 = vld [vmem:[%s219 + $0x10] sm:$0xff]
    %v223 = vld [vmem:[%s219 + $0x18] sm:$0xff]
    %v224 = vld [vmem:[%s219 + $0x20] sm:$0xff]
    %v225 = vld [vmem:[%s219 + $0x28] sm:$0xff]
    %v226 = vld [vmem:[%s219 + $0x30] sm:$0xff]
    %v227 = vld [vmem:[%s219 + $0x38] sm:$0xff]
    %s228 = scalar_lea.vmem %s2, 2
    %v229 = vld [vmem:[%s228] sm:$0x1]
    %v231 = vlaneseq
    %v232 = vshrl.u32 %v231, 7
    %v233 = vsub.s32 0, %v232
    %v234 = vrot.slane %v229, %v233
    %v237 = vsel %vm143, %v218, 0
    %239 = vmatprep.subr.mxu0 0.0
    %240 = vmatpush1.msra.mxu0 %v220
    %241 = vmatprep.subr.mxu0 0.0
    %242 = vmatpush1.msra.mxu0 %v221
    %243 = vmatprep.subr.mxu0 0.0
    %244 = vmatpush1.msra.mxu0 %v222
    %245 = vmatprep.subr.mxu0 0.0
    %246 = vmatpush1.msra.mxu0 %v223
    %247 = vmatprep.subr.mxu0 0.0
    %248 = vmatpush1.msra.mxu0 %v224
    %249 = vmatprep.subr.mxu0 0.0
    %250 = vmatpush1.msra.mxu0 %v225
    %251 = vmatprep.subr.mxu0 0.0
    %252 = vmatpush1.msra.mxu0 %v226
    %253 = vmatprep.subr.mxu0 0.0
    %254 = vmatpush1.msra.mxu0 %v227
    %255 = vmatprep.subr.mxu0 0.0
    %256 = vmatpush1.msra.mxu0 0.0
    %257 = vmatprep.subr.mxu0 0.0
    %258 = vmatpush1.msra.mxu0 0.0
    %259 = vmatprep.subr.mxu0 0.0
    %260 = vmatpush1.msra.mxu0 0.0
    %261 = vmatprep.subr.mxu0 0.0
    %262 = vmatpush1.msra.mxu0 0.0
    %263 = vmatprep.subr.mxu0 0.0
    %264 = vmatpush1.msra.mxu0 0.0
    %265 = vmatprep.subr.mxu0 0.0
    %266 = vmatpush1.msra.mxu0 0.0
    %267 = vmatprep.subr.mxu0 0.0
    %268 = vmatpush1.msra.mxu0 0.0
    %269 = vmatprep.subr.mxu0 0.0
    %270 = vmatpush1.msra.mxu0 0.0
    %271 = vmatprep.subr.mxu0 0.0
    %272 = vmatpush1.msra.mxu0 0.0
    %273 = vmatprep.subr.mxu0 0.0
    %274 = vmatpush1.msra.mxu0 0.0
    %275 = vmatprep.subr.mxu0 0.0
    %276 = vmatpush1.msra.mxu0 0.0
    %277 = vmatprep.subr.mxu0 0.0
    %278 = vmatpush1.msra.mxu0 0.0
    %279 = vmatprep.subr.mxu0 0.0
    %280 = vmatpush1.msra.mxu0 0.0
    %281 = vmatprep.subr.mxu0 0.0
    %282 = vmatpush1.msra.mxu0 0.0
    %283 = vmatprep.subr.mxu0 0.0
    %284 = vmatpush1.msra.mxu0 0.0
    %285 = vmatprep.subr.mxu0 0.0
    %286 = vmatpush1.msra.mxu0 0.0
    %287 = vmatprep.subr.mxu0 0.0
    %288 = vmatpush1.msra.mxu0 0.0
    %289 = vmatprep.subr.mxu0 0.0
    %290 = vmatpush1.msra.mxu0 0.0
    %291 = vmatprep.subr.mxu0 0.0
    %292 = vmatpush1.msra.mxu0 0.0
    %293 = vmatprep.subr.mxu0 0.0
    %294 = vmatpush1.msra.mxu0 0.0
    %295 = vmatprep.subr.mxu0 0.0
    %296 = vmatpush1.msra.mxu0 0.0
    %297 = vmatprep.subr.mxu0 0.0
    %298 = vmatpush1.msra.mxu0 0.0
    %299 = vmatprep.subr.mxu0 0.0
    %300 = vmatpush1.msra.mxu0 0.0
    %301 = vmatprep.subr.mxu0 0.0
    %302 = vmatpush1.msra.mxu0 0.0
    %303 = vmatprep.mubr.f32.mxu0 0.0
    %304 = vmatmul.mubr.f32.gmra.mrb[0].mxu0 %v237
    %v305 = vpop.f32.mrb[0].mxu0
    %v306 = vadd.f32 %v234, %v305
    %v307 = vpop.f32.mrb[0].mxu0
    %308 = vdwg.mxu0
    %v309 = vmax.f32 %v306, 0.0
    %v310 = vadd.f32 %v218, %v309
    %s311 = scalar_lea.vmem [#allocation5], 192
    %v312 = vld [vmem:[%s311] sm:$0xff]
    %v313 = vld [vmem:[%s311 + $0x8] sm:$0xff]
    %v314 = vld [vmem:[%s311 + $0x10] sm:$0xff]
    %v315 = vld [vmem:[%s311 + $0x18] sm:$0xff]
    %v316 = vld [vmem:[%s311 + $0x20] sm:$0xff]
    %v317 = vld [vmem:[%s311 + $0x28] sm:$0xff]
    %v318 = vld [vmem:[%s311 + $0x30] sm:$0xff]
    %v319 = vld [vmem:[%s311 + $0x38] sm:$0xff]
    %s320 = scalar_lea.vmem %s2, 3
    %v321 = vld [vmem:[%s320] sm:$0x1]
    %v323 = vlaneseq
    %v324 = vshrl.u32 %v323, 7
    %v325 = vsub.s32 0, %v324
    %v326 = vrot.slane %v321, %v325
    %v329 = vsel %vm143, %v310, 0
    %331 = vmatprep.subr.mxu0 0.0
    %332 = vmatpush1.msra.mxu0 %v312
    %333 = vmatprep.subr.mxu0 0.0
    %334 = vmatpush1.msra.mxu0 %v313
    %335 = vmatprep.subr.mxu0 0.0
    %336 = vmatpush1.msra.mxu0 %v314
    %337 = vmatprep.subr.mxu0 0.0
    %338 = vmatpush1.msra.mxu0 %v315
    %339 = vmatprep.subr.mxu0 0.0
    %340 = vmatpush1.msra.mxu0 %v316
    %341 = vmatprep.subr.mxu0 0.0
    %342 = vmatpush1.msra.mxu0 %v317
    %343 = vmatprep.subr.mxu0 0.0
    %344 = vmatpush1.msra.mxu0 %v318
    %345 = vmatprep.subr.mxu0 0.0
    %346 = vmatpush1.msra.mxu0 %v319
    %347 = vmatprep.subr.mxu0 0.0
    %348 = vmatpush1.msra.mxu0 0.0
    %349 = vmatprep.subr.mxu0 0.0
    %350 = vmatpush1.msra.mxu0 0.0
    %351 = vmatprep.subr.mxu0 0.0
    %352 = vmatpush1.msra.mxu0 0.0
    %353 = vmatprep.subr.mxu0 0.0
    %354 = vmatpush1.msra.mxu0 0.0
    %355 = vmatprep.subr.mxu0 0.0
    %356 = vmatpush1.msra.mxu0 0.0
    %357 = vmatprep.subr.mxu0 0.0
    %358 = vmatpush1.msra.mxu0 0.0
    %359 = vmatprep.subr.mxu0 0.0
    %360 = vmatpush1.msra.mxu0 0.0
    %361 = vmatprep.subr.mxu0 0.0
    %362 = vmatpush1.msra.mxu0 0.0
    %363 = vmatprep.subr.mxu0 0.0
    %364 = vmatpush1.msra.mxu0 0.0
    %365 = vmatprep.subr.mxu0 0.0
    %366 = vmatpush1.msra.mxu0 0.0
    %367 = vmatprep.subr.mxu0 0.0
    %368 = vmatpush1.msra.mxu0 0.0
    %369 = vmatprep.subr.mxu0 0.0
    %370 = vmatpush1.msra.mxu0 0.0
    %371 = vmatprep.subr.mxu0 0.0
    %372 = vmatpush1.msra.mxu0 0.0
    %373 = vmatprep.subr.mxu0 0.0
    %374 = vmatpush1.msra.mxu0 0.0
    %375 = vmatprep.subr.mxu0 0.0
    %376 = vmatpush1.msra.mxu0 0.0
    %377 = vmatprep.subr.mxu0 0.0
    %378 = vmatpush1.msra.mxu0 0.0
    %379 = vmatprep.subr.mxu0 0.0
    %380 = vmatpush1.msra.mxu0 0.0
    %381 = vmatprep.subr.mxu0 0.0
    %382 = vmatpush1.msra.mxu0 0.0
    %383 = vmatprep.subr.mxu0 0.0
    %384 = vmatpush1.msra.mxu0 0.0
    %385 = vmatprep.subr.mxu0 0.0
    %386 = vmatpush1.msra.mxu0 0.0
    %387 = vmatprep.subr.mxu0 0.0
    %388 = vmatpush1.msra.mxu0 0.0
    %389 = vmatprep.subr.mxu0 0.0
    %390 = vmatpush1.msra.mxu0 0.0
    %391 = vmatprep.subr.mxu0 0.0
    %392 = vmatpush1.msra.mxu0 0.0
    %393 = vmatprep.subr.mxu0 0.0
    %394 = vmatpush1.msra.mxu0 0.0
    %395 = vmatprep.mubr.f32.mxu0 0.0
    %396 = vmatmul.mubr.f32.gmra.mrb[0].mxu0 %v329
    %v397 = vpop.f32.mrb[0].mxu0
    %v398 = vadd.f32 %v326, %v397
    %v399 = vpop.f32.mrb[0].mxu0
    %400 = vdwg.mxu0
    %v401 = vmax.f32 %v398, 0.0
    %402 = vst.msk [vmem:[#allocation7] sm:$0xff] %vm51, %v401
    // Predicated region
    $region22: #{tpu_custom_call.1} parent=1 // pred_check
      _
    $region23: #{tpu_custom_call.1} parent=1 // pred_check_branch
      %404 = sbr.rel (0) target = $region25
    $region24: #{tpu_custom_call.1} parent=1 // pred_region
      %s406 = ssub.s32 128, 128
      %407 = vsyncadd [#allocation4], %s406
      %s409 = sshll.u32 [#allocation7], 4
      %s410 = int_to_ptr.vmem [resolvable:$true] %s409
      %412 = dma.vmem_to_hbm [thread:$0]  %s410, 128, %s3, [#allocation4]
    $region25: #{tpu_custom_call.1} parent=1 // pred_fallthru
      _
    // Predicated region
    $region26: #{tpu_custom_call.1} parent=1 // pred_check
      _
    $region27: #{tpu_custom_call.1} parent=1 // pred_check_branch
      %414 = sbr.rel (0) target = $region29
    $region28: #{tpu_custom_call.1} parent=1 // pred_region
      %415 = dma.done [#allocation4], 128
    $region29: #{tpu_custom_call.1} parent=1 // pred_fallthru
      _
    %416 = vsyncpa [#allocation3], 1
    %417 = vsyncpa [#allocation6], 1
    %418 = vsyncpa [#allocation4], 1

</llo_original>
